<compile_context>
chip_gen: v6e
topology: v6e:2x2x1
jax: 0.10.0
libtpu: 0.0.40
codegen_flags: <defaults>
</compile_context>

<pallas_src>
import functools

import jax
import jax.numpy as jnp
from jax.experimental import pallas as pl
from jax.experimental.pallas import tpu as pltpu


def _round_up(n, m):
    return ((n + m - 1) // m) * m


def _vmem_capacity_bytes():
    # Generation-aware VMEM capacity (128 MiB on v5e/v6e, 64 MiB per TC on v7x).
    try:
        return int(pltpu.get_tpu_info().vmem_capacity_bytes)
    except Exception:
        # Capability probe only (correctness unaffected); assume the smallest
        # real part (v7x per-TC) so the derived caps stay safe.
        return 64 << 20


_VMEM_CAP = _vmem_capacity_bytes()


def _vmem_limit(working_set_bytes):
    # 1.5x headroom over the estimate, floor at the 32 MiB scoped default,
    # cap at 3/4 of physical VMEM (~96 MiB on v5e/v6e, ~48 MiB on v7x).
    cap = (_VMEM_CAP * 3) // 4
    return int(min(max(working_set_bytes * 3 // 2 + (2 << 20), 32 << 20), cap))


# --------------------------------------------------------------------------
# Kernels
# --------------------------------------------------------------------------
def _ae_kernel_resident(x_ref, w1_ref, b1_ref, w2_ref, b2_ref, o_ref, h_ref):
    """Both full weights resident in VMEM; grid walks batch tiles only."""
    # x block arrives in its native dtype; cast in-register (no wrapper pass).
    x = x_ref[...].astype(w1_ref.dtype)
    h = jnp.tanh(
        jnp.dot(x, w1_ref[...], preferred_element_type=jnp.float32)
        + b1_ref[...])
    # Stage the hidden activation in VMEM at compute precision (halves the
    # intermediate footprint vs. keeping it f32 live; tightest on v7x).
    h_ref[...] = h.astype(h_ref.dtype)
    y = jnp.tanh(
        jnp.dot(h_ref[...], w2_ref[...], preferred_element_type=jnp.float32)
        + b2_ref[...])
    o_ref[...] = y.astype(o_ref.dtype)


def _ae_kernel_tiled(x_ref, w1_ref, b1_ref, w2_ref, b2_ref, o_ref, acc_ref):
    """Weight-tiled variant: grid axis 1 streams emb_dim chunks (reduction for
    the second matmul).  Used when both full weights exceed the VMEM budget
    (mainly v7x's 64 MiB)."""
    e = pl.program_id(1)

    @pl.when(e == 0)
    def _init():
        acc_ref[...] = jnp.zeros_like(acc_ref)

    x = x_ref[...].astype(w1_ref.dtype)
    h = jnp.tanh(
        jnp.dot(x, w1_ref[...], preferred_element_type=jnp.float32)
        + b1_ref[...])
    acc_ref[...] += jnp.dot(h.astype(w2_ref.dtype), w2_ref[...],
                            preferred_element_type=jnp.float32)

    @pl.when(e == pl.num_programs(1) - 1)
    def _finalize():
        o_ref[...] = jnp.tanh(acc_ref[...] + b2_ref[...]).astype(o_ref.dtype)


# --------------------------------------------------------------------------
# Jitted implementation
# --------------------------------------------------------------------------
@functools.partial(jax.jit, static_argnames=("block_b", "emb_block", "out_dtype"))
def _ae_forward_impl(x, w1, b1, w2, b2, *, block_b, emb_block, out_dtype):
    B, X = x.shape
    E = w1.shape[1]
    bb = block_b
    b_pad = _round_up(B, bb)
    if b_pad != B:
        # Only a ragged batch tail gets padded; feature dims use full-extent
        # blocks so there is no lane padding / extra HBM pass over x or out.
        x = jnp.pad(x, ((0, b_pad - B), (0, 0)))
    grid_b = b_pad // bb

    cd = w1.dtype
    cd_b = jnp.dtype(cd).itemsize
    in_b = jnp.dtype(x.dtype).itemsize
    out_b = jnp.dtype(out_dtype).itemsize
    Xl, El = _round_up(X, 128), _round_up(E, 128)      # lane-padded VMEM sizes
    X8, E8 = _round_up(X, 8), _round_up(E, 8)

    cost = pl.CostEstimate(
        flops=4 * b_pad * X * E,                        # two matmuls
        transcendentals=b_pad * (E + X),                # two tanh layers
        bytes_accessed=(b_pad * X * (in_b + out_b)      # x read + out write
                        + 2 * X * E * cd_b              # W1 + W2
                        + (E + X) * 4),                 # biases
    )

    if emb_block is None:
        # ----- resident-weights path ---------------------------------------
        w_vmem = (X8 * El + E8 * Xl) * cd_b
        working = (
            2 * bb * Xl * in_b          # x tile, double-buffered
            + 2 * bb * Xl * out_b       # out tile, double-buffered
            + 2 * w_vmem                # W1+W2 resident (pipeline double-buffers)
            + 2 * 8 * (El + Xl) * 4     # biases (sublane-padded)
            + bb * El * cd_b            # staged h (scratch)
            + bb * (El + Xl) * 4        # f32 pre-activation intermediates
        )
        out = pl.pallas_call(
            _ae_kernel_resident,
            out_shape=jax.ShapeDtypeStruct((b_pad, X), out_dtype),
            grid_spec=pltpu.PrefetchScalarGridSpec(
                num_scalar_prefetch=0,
                grid=(grid_b,),
                in_specs=[
                    pl.BlockSpec((bb, X), lambda i: (i, 0)),   # x tile
                    pl.BlockSpec((X, E), lambda i: (0, 0)),    # W1 (resident)
                    pl.BlockSpec((1, E), lambda i: (0, 0)),    # b1
                    pl.BlockSpec((E, X), lambda i: (0, 0)),    # W2 (resident)
                    pl.BlockSpec((1, X), lambda i: (0, 0)),    # b2
                ],
                out_specs=pl.BlockSpec((bb, X), lambda i: (i, 0)),
                scratch_shapes=[pltpu.VMEM((bb, E), cd)],      # staged hidden act
            ),
            compiler_params=pltpu.CompilerParams(
                dimension_semantics=("parallel",),   # batch tiles split across TCs
                vmem_limit_bytes=_vmem_limit(working),
            ),
            cost_estimate=cost,
        )(x, w1, b1, w2, b2)
    else:
        # ----- weight-tiled path (emb_dim reduction) ------------------------
        te = emb_block
        if E % te != 0:
            raise ValueError(f"emb_block={te} must divide emb_dim={E}")
        grid_e = E // te
        tel = _round_up(te, 128)
        w_vmem = (X8 * tel + _round_up(te, 8) * Xl) * cd_b
        working = (
            2 * bb * Xl * in_b + 2 * bb * Xl * out_b   # x / out tiles
            + 2 * w_vmem                               # streamed W1/W2 chunks
            + 2 * 8 * (tel + Xl) * 4                   # bias chunks
            + bb * Xl * 4                              # f32 accumulator scratch
            + bb * (tel + Xl) * 4                      # f32 intermediates
        )
        out = pl.pallas_call(
            _ae_kernel_tiled,
            out_shape=jax.ShapeDtypeStruct((b_pad, X), out_dtype),
            grid_spec=pltpu.PrefetchScalarGridSpec(
                num_scalar_prefetch=0,
                grid=(grid_b, grid_e),                 # reduction axis last
                in_specs=[
                    pl.BlockSpec((bb, X), lambda i, e: (i, 0)),   # x tile
                    pl.BlockSpec((X, te), lambda i, e: (0, e)),   # W1 chunk
                    pl.BlockSpec((1, te), lambda i, e: (0, e)),   # b1 chunk
                    pl.BlockSpec((te, X), lambda i, e: (e, 0)),   # W2 chunk
                    pl.BlockSpec((1, X), lambda i, e: (0, 0)),    # b2
                ],
                out_specs=pl.BlockSpec((bb, X), lambda i, e: (i, 0)),
                scratch_shapes=[pltpu.VMEM((bb, X), jnp.float32)],  # f32 acc
            ),
            compiler_params=pltpu.CompilerParams(
                dimension_semantics=("parallel", "arbitrary"),
                vmem_limit_bytes=_vmem_limit(working),
            ),
            cost_estimate=cost,
        )(x, w1, b1, w2, b2)

    if b_pad != B:
        out = out[:B]
    return out


# --------------------------------------------------------------------------
# Tiling heuristics
# --------------------------------------------------------------------------
def _choose_block_b(B, X, E, cd_b, in_b, out_b):
    if B < 256:
        return _round_up(B, 8)              # one tile; tiny problems go to XLA
    Xl, El = _round_up(X, 128), _round_up(E, 128)
    budget = max(8 << 20, (_VMEM_CAP * 3) // 4 - 4 * X * E * cd_b)
    for bb in (1024, 512, 256, 128):        # biggest tile that fits, grid >= 2
        if B < 2 * bb:                      # keep 2+ grid steps (v7x megacore)
            continue
        tile = (2 * bb * Xl * in_b + 2 * bb * Xl * out_b
                + bb * El * cd_b + bb * (El + Xl) * 4)
        if tile <= budget:
            return bb
    return 128


def _choose_emb_block(E):
    for te in (1024, 512, 256, 128):
        if E % te == 0:
            return te
    # TODO(synk): for huge emb_dim that is not a multiple of 128, lane-pad the
    # weights once at prepare_params time so the v7x tiled path still applies.
    return None


# --------------------------------------------------------------------------
# Public API
# --------------------------------------------------------------------------
def prepare_params(w1, b1, w2, b2, compute_dtype=jnp.bfloat16):
    """One-time parameter prep (call once, reuse every forward call).

    Weights are cast to the MXU compute dtype (bf16 by default; pass
    jnp.float32 for numerics matching f32 PyTorch), biases stay f32 for the
    f32 bias-add + tanh epilogue.  Layout is [in, out] (transpose of
    nn.Linear's [out, in]).  Doing this once removes the per-call pad/cast
    HBM passes the old wrapper paid."""
    return (jnp.asarray(w1, compute_dtype),
            jnp.asarray(b1, jnp.float32).reshape(1, -1),
            jnp.asarray(w2, compute_dtype),
            jnp.asarray(b2, jnp.float32).reshape(1, -1))


def autoencoder_forward(x, w1, b1, w2, b2, *, block_b=None, emb_block=None,
                        out_dtype=None):
    """Fused forward pass: tanh(tanh(x @ w1 + b1) @ w2 + b2).

    w1/b1/w2/b2 should come from `prepare_params`.  `out_dtype` may be set to
    jnp.bfloat16 to halve the output HBM write when the caller accepts it."""
    B, X = x.shape
    E = w1.shape[1]
    out_dtype = jnp.dtype(out_dtype if out_dtype is not None else x.dtype)

    # Problems smaller than one (8,128) vreg tile are pure launch/DMA overhead
    # in a Pallas kernel; plain XLA is strictly faster there.
    if B * max(X, E) < 8 * 128:
        return reference_forward(x, w1, b1, w2, b2).astype(out_dtype)

    cd_b = jnp.dtype(w1.dtype).itemsize
    in_b = jnp.dtype(x.dtype).itemsize
    out_b = out_dtype.itemsize

    if block_b is None:
        block_b = _choose_block_b(B, X, E, cd_b, in_b, out_b)
    bb = max(8, _round_up(min(block_b, _round_up(B, 8)), 8))

    # Weight residency: keep both full weights in VMEM when they fit the
    # generation-aware budget (almost always on v5e/v6e's 128 MiB); otherwise
    # stream emb_dim chunks with an f32 accumulator (v7x's 64 MiB).
    if emb_block is None:
        w_bytes = 2 * X * E * cd_b                   # W1 + W2
        resident_budget = (_VMEM_CAP * 2) // 5       # ~51 MiB v5e/v6e, ~25 MiB v7x
        if 2 * w_bytes > resident_budget:            # pipeline double-buffers them
            emb_block = _choose_emb_block(E)

    return _ae_forward_impl(x, w1, b1, w2, b2, block_b=bb,
                            emb_block=emb_block, out_dtype=out_dtype)


def get_embedding(x, w1, b1):
    """Matches Autoencoder.get_embedding (fc1 + tanh); plain XLA is optimal
    for this single, memory-bound layer."""
    return jnp.tanh(x @ w1.astype(x.dtype) + b1)


def init_params(key, x_dim, emb_dim, dtype=jnp.float32):
    """Deterministic init matching nn.Linear's U(-1/sqrt(in), 1/sqrt(in)),
    stored as [in, out] (transpose of PyTorch's [out, in])."""
    k1, k2, k3, k4 = jax.random.split(key, 4)
    lim1 = 1.0 / jnp.sqrt(jnp.float32(x_dim))
    lim2 = 1.0 / jnp.sqrt(jnp.float32(emb_dim))
    w1 = jax.random.uniform(k1, (x_dim, emb_dim), dtype, -lim1, lim1)
    b1 = jax.random.uniform(k2, (1, emb_dim), dtype, -lim1, lim1)
    w2 = jax.random.uniform(k3, (emb_dim, x_dim), dtype, -lim2, lim2)
    b2 = jax.random.uniform(k4, (1, x_dim), dtype, -lim2, lim2)
    return w1, b1, w2, b2


def reference_forward(x, w1, b1, w2, b2):
    h = jnp.tanh(x @ w1 + b1)
    return jnp.tanh(h @ w2 + b2)


if __name__ == "__main__":
    key = jax.random.PRNGKey(0)
    kx, kp, kx2, kp2 = jax.random.split(key, 4)

    # --- Test 1: resident-weight path (two 128-row batch tiles, bf16 MXU). ----
    B, X, E = 256, 64, 32
    x = jax.random.normal(kx, (B, X), jnp.float32)
    w1, b1, w2, b2 = init_params(kp, X, E)
    ref = reference_forward(x, w1, b1, w2, b2)

    out = autoencoder_forward(x, *prepare_params(w1, b1, w2, b2))
    out = jax.block_until_ready(out)
    assert out.shape == (B, X) and out.dtype == x.dtype
    assert jnp.allclose(out, ref, atol=2e-2, rtol=2e-2), float(
        jnp.max(jnp.abs(out - ref)))

    # --- Test 2: f32 compute path (for callers matching f32 PyTorch). ---------
    out32 = autoencoder_forward(x, *prepare_params(w1, b1, w2, b2, jnp.float32))
    out32 = jax.block_until_ready(out32)
    assert jnp.allclose(out32, ref, atol=2e-2, rtol=2e-2), float(
        jnp.max(jnp.abs(out32 - ref)))

    # --- Test 3: weight-tiled path (emb_dim streamed in 128-wide chunks with an
    #     f32 accumulator -- the v7x large-weight fallback) + ragged batch. -----
    B2, X2, E2 = 201, 64, 256
    x2 = jax.random.normal(kx2, (B2, X2), jnp.float32)
    p2 = init_params(kp2, X2, E2)
    ref2 = reference_forward(x2, *p2)
    out2 = autoencoder_forward(x2, *prepare_params(*p2), emb_block=128)
    out2 = jax.block_until_ready(out2)
    assert out2.shape == (B2, X2)
    assert jnp.allclose(out2, ref2, atol=2e-2, rtol=2e-2), float(
        jnp.max(jnp.abs(out2 - ref2)))

    # TODO(synk): forward_context multiplies a Python list of tensors by a
    # tensor scalar (torch.exp(-k) * list), which is not valid tensor
    # semantics; only forward() and get_embedding() are implemented here.
    # (nn.Sigmoid is constructed by the module but never used in forward.)
    print("KERNEL_OK")
</pallas_src>

<mosaic_0001>
module attributes {stable_mosaic.version = 11 : i64} {
  func.func @_ae_kernel_resident(%arg0: i32, %arg1: memref<128x64xf32, #tpu.memory_space<vmem>>, %arg2: memref<64x32xbf16, #tpu.memory_space<vmem>>, %arg3: memref<1x32xf32, #tpu.memory_space<vmem>>, %arg4: memref<32x64xbf16, #tpu.memory_space<vmem>>, %arg5: memref<1x64xf32, #tpu.memory_space<vmem>>, %arg6: memref<128x64xf32, #tpu.memory_space<vmem>>, %arg7: memref<128x32xbf16, #tpu.memory_space<vmem>>) attributes {dimension_semantics = [#tpu.dimension_semantics<parallel>], iteration_bounds = array<i64: 2>, scalar_prefetch = 0 : i64, scratch_operands = 1 : i64, tpu.core_type = #tpu.core_type<tc>, window_params = [{transform_indices = @transform_0, window_bounds = array<i64: 128, 64>}, {pipeline_mode = #tpu.pipeline_mode<synchronous>, transform_indices = @transform_1, window_bounds = array<i64: 64, 32>}, {pipeline_mode = #tpu.pipeline_mode<synchronous>, transform_indices = @transform_2, window_bounds = array<i64: 1, 32>}, {pipeline_mode = #tpu.pipeline_mode<synchronous>, transform_indices = @transform_3, window_bounds = array<i64: 32, 64>}, {pipeline_mode = #tpu.pipeline_mode<synchronous>, transform_indices = @transform_4, window_bounds = array<i64: 1, 64>}, {transform_indices = @transform_5, window_bounds = array<i64: 128, 64>}]} {
    %c0 = arith.constant 0 : index
    %c0_0 = arith.constant 0 : index
    %0 = vector.load %arg1[%c0, %c0_0] : memref<128x64xf32, #tpu.memory_space<vmem>>, vector<128x64xf32>
    %1 = arith.truncf %0 : vector<128x64xf32> to vector<128x64xbf16>
    %c0_1 = arith.constant 0 : index
    %c0_2 = arith.constant 0 : index
    %2 = vector.load %arg2[%c0_1, %c0_2] : memref<64x32xbf16, #tpu.memory_space<vmem>>, vector<64x32xbf16>
    %cst = arith.constant dense<0.000000e+00> : vector<128x32xf32>
    %3 = tpu.matmul %1, %2, %cst {dimension_numbers = #tpu.dot_dimension_numbers<[1], [0], [0], [1], [0, 0, 1, 1], [], []>} : vector<128x64xbf16>, vector<64x32xbf16>, vector<128x32xf32> -> vector<128x32xf32>
    %c0_3 = arith.constant 0 : index
    %c0_4 = arith.constant 0 : index
    %4 = vector.load %arg3[%c0_3, %c0_4] : memref<1x32xf32, #tpu.memory_space<vmem>>, vector<1x32xf32>
    %5 = vector.broadcast %4 : vector<1x32xf32> to vector<128x32xf32>
    %6 = arith.addf %3, %5 : vector<128x32xf32>
    %7 = math.tanh %6 : vector<128x32xf32>
    %8 = arith.truncf %7 : vector<128x32xf32> to vector<128x32xbf16>
    %c0_5 = arith.constant 0 : index
    %c0_6 = arith.constant 0 : index
    %9 = vector.load %arg7[%c0_5, %c0_6] : memref<128x32xbf16, #tpu.memory_space<vmem>>, vector<128x32xbf16>
    tpu.vector_store %arg7[%c0_5, %c0_6], %8 {strides = array<i32>} : memref<128x32xbf16, #tpu.memory_space<vmem>>, vector<128x32xbf16>,
    %c0_7 = arith.constant 0 : index
    %c0_8 = arith.constant 0 : index
    %10 = vector.load %arg7[%c0_7, %c0_8] : memref<128x32xbf16, #tpu.memory_space<vmem>>, vector<128x32xbf16>
    %c0_9 = arith.constant 0 : index
    %c0_10 = arith.constant 0 : index
    %11 = vector.load %arg4[%c0_9, %c0_10] : memref<32x64xbf16, #tpu.memory_space<vmem>>, vector<32x64xbf16>
    %cst_11 = arith.constant dense<0.000000e+00> : vector<128x64xf32>
    %12 = tpu.matmul %10, %11, %cst_11 {dimension_numbers = #tpu.dot_dimension_numbers<[1], [0], [0], [1], [0, 0, 1, 1], [], []>} : vector<128x32xbf16>, vector<32x64xbf16>, vector<128x64xf32> -> vector<128x64xf32>
    %c0_12 = arith.constant 0 : index
    %c0_13 = arith.constant 0 : index
    %13 = vector.load %arg5[%c0_12, %c0_13] : memref<1x64xf32, #tpu.memory_space<vmem>>, vector<1x64xf32>
    %14 = vector.broadcast %13 : vector<1x64xf32> to vector<128x64xf32>
    %15 = arith.addf %12, %14 : vector<128x64xf32>
    %16 = math.tanh %15 : vector<128x64xf32>
    %c0_14 = arith.constant 0 : index
    %c0_15 = arith.constant 0 : index
    %17 = vector.load %arg6[%c0_14, %c0_15] : memref<128x64xf32, #tpu.memory_space<vmem>>, vector<128x64xf32>
    tpu.vector_store %arg6[%c0_14, %c0_15], %16 {strides = array<i32>} : memref<128x64xf32, #tpu.memory_space<vmem>>, vector<128x64xf32>,
    return
  }
  func.func @transform_0(%arg0: i32) -> (i32, i32) {
    %c0_i32 = arith.constant 0 : i32
    %c0_i32_0 = arith.constant 0 : i32
    return %arg0, %c0_i32 : i32, i32
  }
  func.func @transform_1(%arg0: i32) -> (i32, i32) {
    %c0_i32 = arith.constant 0 : i32
    %c0_i32_0 = arith.constant 0 : i32
    %c0_i32_1 = arith.constant 0 : i32
    return %c0_i32, %c0_i32_0 : i32, i32
  }
  func.func @transform_2(%arg0: i32) -> (i32, i32) {
    %c0_i32 = arith.constant 0 : i32
    %c0_i32_0 = arith.constant 0 : i32
    %c0_i32_1 = arith.constant 0 : i32
    return %c0_i32, %c0_i32_0 : i32, i32
  }
  func.func @transform_3(%arg0: i32) -> (i32, i32) {
    %c0_i32 = arith.constant 0 : i32
    %c0_i32_0 = arith.constant 0 : i32
    %c0_i32_1 = arith.constant 0 : i32
    return %c0_i32, %c0_i32_0 : i32, i32
  }
  func.func @transform_4(%arg0: i32) -> (i32, i32) {
    %c0_i32 = arith.constant 0 : i32
    %c0_i32_0 = arith.constant 0 : i32
    %c0_i32_1 = arith.constant 0 : i32
    return %c0_i32, %c0_i32_0 : i32, i32
  }
  func.func @transform_5(%arg0: i32) -> (i32, i32) {
    %c0_i32 = arith.constant 0 : i32
    %c0_i32_0 = arith.constant 0 : i32
    return %arg0, %c0_i32 : i32, i32
  }
}

</mosaic_0001>

<llo_original>
// kernel: _ae_forward_impl.1
$region0: #{_ae_forward_impl.1}
  #allocation0 [shape = 'u32[]', space=smem, size = 0x4, offset = 0x4, fixed_abs, tag = 'smem constant byte address 0x4 - core index']
  #allocation1 [shape = 'u32[144,128]{1,0:T(1,128)}', space=vmem, size = 0x12000, scoped, tag = 'internal scratch']
  #allocation2 [shape = 'bf16[128,32]{1,0:T(8,128)(2,1)}', space=vmem, size = 0x8000, scoped, tag = 'scratch operand']
  %s0 = inlined_call_operand.vmem [shape: f32[256,64], index: 0, kind: input, shape index: {}]
  %s1 = inlined_call_operand.vmem [shape: bf16[64,32], index: 1, kind: input, shape index: {}]
  %s2 = inlined_call_operand.vmem [shape: f32[1,32], index: 2, kind: input, shape index: {}]
  %s3 = inlined_call_operand.vmem [shape: bf16[32,64], index: 3, kind: input, shape index: {}]
  %s4 = inlined_call_operand.vmem [shape: f32[1,64], index: 4, kind: input, shape index: {}]
  %s5 = inlined_call_operand.vmem [shape: f32[256,64], index: 5, kind: output, shape index: {}]
  %s6 = sld [smem:[#allocation0]]
  $region53: #{_ae_forward_impl.1} parent=0
    _
  %s8 = ssub.s32 1, %s6
  %s9 = scalar_select 0, %s8, %s6
  loop: start=0, step=1, limit=4
  $region2: #{_ae_forward_impl.1} parent=0 // loop_pre_header
    _
  $region3: #{_ae_forward_impl.1} parent=0 // loop_header
    %s11 = sphi 0, %s15
    %p12 = scmp.ge.s32.totalorder %s11, 4
    %s21 = sphi 0, %s23
    %s24 = sphi 0, %s21
    %s25 = sphi 0, %s24
    %s41 = sphi 0, %s25
    %s45 = sphi 0, %s45
    %s47 = sphi 0, %s45
    %s48 = sphi 0, %s47
    %s62 = sphi 0, %s48
    %s66 = sphi 0, %s66
    %s68 = sphi 0, %s66
    %s69 = sphi 0, %s68
    %s83 = sphi 0, %s69
    %s87 = sphi 0, %s87
    %s89 = sphi 0, %s87
    %s90 = sphi 0, %s89
    %s104 = sphi 0, %s90
    %s108 = sphi 0, %s108
    %s110 = sphi 0, %s108
    %s111 = sphi 0, %s110
    %s125 = sphi 0, %s111
    %s131 = sphi 0, %s133
    %s134 = sphi 0, %s131
    %s135 = sphi 0, %s134
    %s151 = sphi 0, %s135
  $region4: #{_ae_forward_impl.1} parent=0 // loop_header_branch
    %14 = sbr.rel (%p12) target = $region8
  $region5: #{_ae_forward_impl.1} parent=0 // loop_body
    %s16 = ssub.s32 %s11, 1
    %s17 = ssub.s32 %s11, 2
    %s18 = sadd.s32 %s11, 1
    %s19 = ssub.s32 %s11, %s18
    %p20 = scmp.eq.s32.totalorder %s19, 0
    %s22 = sadd.s32 %s21, 1
    %s23 = scalar_select %p20, %s21, %s22
    %p26 = pneg %p20
    %p27 = scmp.eq.s32.totalorder %s11, 1
    %p28 = por %p26, %p27
    %p29 = scmp.ne.s32.totalorder %s21, %s24
    %p30 = scmp.eq.s32.totalorder %s11, 0
    %p31 = por %p29, %p30
    %p32 = scmp.ne.s32.totalorder %s21, %s24
    %p33 = scmp.eq.s32.totalorder %s16, 1
    %p34 = por %p32, %p33
    %p35 = scmp.ne.s32.totalorder %s24, %s25
    %p36 = scmp.eq.s32.totalorder %s16, 0
    %p37 = por %p35, %p36
    %p38 = scmp.ne.s32.totalorder %s24, %s25
    %p39 = scmp.eq.s32.totalorder %s17, 1
    %p40 = por %p38, %p39
    %p42 = scmp.ne.s32.totalorder %s25, %s41
    %p43 = scmp.eq.s32.totalorder %s17, 0
    %p44 = por %p42, %p43
    %s46 = sadd.s32 %s45, 1
    %p49 = scmp.eq.s32.totalorder %s11, 1
    %p50 = scmp.ne.s32.totalorder %s45, %s47
    %p51 = scmp.eq.s32.totalorder %s11, 0
    %p52 = por %p50, %p51
    %p53 = scmp.ne.s32.totalorder %s45, %s47
    %p54 = scmp.eq.s32.totalorder %s16, 1
    %p55 = por %p53, %p54
    %p56 = scmp.ne.s32.totalorder %s47, %s48
    %p57 = scmp.eq.s32.totalorder %s16, 0
    %p58 = por %p56, %p57
    %p59 = scmp.ne.s32.totalorder %s47, %s48
    %p60 = scmp.eq.s32.totalorder %s17, 1
    %p61 = por %p59, %p60
    %p63 = scmp.ne.s32.totalorder %s48, %s62
    %p64 = scmp.eq.s32.totalorder %s17, 0
    %p65 = por %p63, %p64
    %s67 = sadd.s32 %s66, 1
    %p70 = scmp.eq.s32.totalorder %s11, 1
    %p71 = scmp.ne.s32.totalorder %s66, %s68
    %p72 = scmp.eq.s32.totalorder %s11, 0
    %p73 = por %p71, %p72
    %p74 = scmp.ne.s32.totalorder %s66, %s68
    %p75 = scmp.eq.s32.totalorder %s16, 1
    %p76 = por %p74, %p75
    %p77 = scmp.ne.s32.totalorder %s68, %s69
    %p78 = scmp.eq.s32.totalorder %s16, 0
    %p79 = por %p77, %p78
    %p80 = scmp.ne.s32.totalorder %s68, %s69
    %p81 = scmp.eq.s32.totalorder %s17, 1
    %p82 = por %p80, %p81
    %p84 = scmp.ne.s32.totalorder %s69, %s83
    %p85 = scmp.eq.s32.totalorder %s17, 0
    %p86 = por %p84, %p85
    %s88 = sadd.s32 %s87, 1
    %p91 = scmp.eq.s32.totalorder %s11, 1
    %p92 = scmp.ne.s32.totalorder %s87, %s89
    %p93 = scmp.eq.s32.totalorder %s11, 0
    %p94 = por %p92, %p93
    %p95 = scmp.ne.s32.totalorder %s87, %s89
    %p96 = scmp.eq.s32.totalorder %s16, 1
    %p97 = por %p95, %p96
    %p98 = scmp.ne.s32.totalorder %s89, %s90
    %p99 = scmp.eq.s32.totalorder %s16, 0
    %p100 = por %p98, %p99
    %p101 = scmp.ne.s32.totalorder %s89, %s90
    %p102 = scmp.eq.s32.totalorder %s17, 1
    %p103 = por %p101, %p102
    %p105 = scmp.ne.s32.totalorder %s90, %s104
    %p106 = scmp.eq.s32.totalorder %s17, 0
    %p107 = por %p105, %p106
    %s109 = sadd.s32 %s108, 1
    %p112 = scmp.eq.s32.totalorder %s11, 1
    %p113 = scmp.ne.s32.totalorder %s108, %s110
    %p114 = scmp.eq.s32.totalorder %s11, 0
    %p115 = por %p113, %p114
    %p116 = scmp.ne.s32.totalorder %s108, %s110
    %p117 = scmp.eq.s32.totalorder %s16, 1
    %p118 = por %p116, %p117
    %p119 = scmp.ne.s32.totalorder %s110, %s111
    %p120 = scmp.eq.s32.totalorder %s16, 0
    %p121 = por %p119, %p120
    %p122 = scmp.ne.s32.totalorder %s110, %s111
    %p123 = scmp.eq.s32.totalorder %s17, 1
    %p124 = por %p122, %p123
    %p126 = scmp.ne.s32.totalorder %s111, %s125
    %p127 = scmp.eq.s32.totalorder %s17, 0
    %p128 = por %p126, %p127
    %s129 = ssub.s32 %s11, %s18
    %p130 = scmp.eq.s32.totalorder %s129, 0
    %s132 = sadd.s32 %s131, 1
    %s133 = scalar_select %p130, %s131, %s132
    %p136 = pneg %p130
    %p137 = scmp.eq.s32.totalorder %s11, 1
    %p138 = por %p136, %p137
    %p139 = scmp.ne.s32.totalorder %s131, %s134
    %p140 = scmp.eq.s32.totalorder %s11, 0
    %p141 = por %p139, %p140
    %p142 = scmp.ne.s32.totalorder %s131, %s134
    %p143 = scmp.eq.s32.totalorder %s16, 1
    %p144 = por %p142, %p143
    %p145 = scmp.ne.s32.totalorder %s134, %s135
    %p146 = scmp.eq.s32.totalorder %s16, 0
    %p147 = por %p145, %p146
    %p148 = scmp.ne.s32.totalorder %s134, %s135
    %p149 = scmp.eq.s32.totalorder %s17, 1
    %p150 = por %p148, %p149
    %p152 = scmp.ne.s32.totalorder %s135, %s151
    %p153 = scmp.eq.s32.totalorder %s17, 0
    %p154 = por %p152, %p153
    %p155 = scmp.le.s32.totalorder 1, %s11
    %p156 = scmp.lt.s32.totalorder %s11, 3
    %p157 = pnand %p155, %p156
    %p158 = pneg %p157
    // Predicated region
    $region9: #{_ae_forward_impl.1} parent=5 // pred_check
      _
    $region10: #{_ae_forward_impl.1} parent=5 // pred_check_branch
      %160 = sbr.rel (%p157) target = $region12
    $region11: #{_ae_forward_impl.1} parent=5 // pred_region
      %s161 = ssub.s32 %s11, 1
      // Predicated region
      $region13: #{_ae_forward_impl.1} parent=11 // pred_check
        %p162 = pneg %p58
      $region14: #{_ae_forward_impl.1} parent=11 // pred_check_branch
        %164 = sbr.rel (%p162) target = $region16
      $region15: #{_ae_forward_impl.1} parent=11 // pred_region
        _
      $region16: #{_ae_forward_impl.1} parent=11 // pred_fallthru
        _
      // Predicated region
      $region17: #{_ae_forward_impl.1} parent=11 // pred_check
        %p165 = pneg %p79
      $region18: #{_ae_forward_impl.1} parent=11 // pred_check_branch
        %167 = sbr.rel (%p165) target = $region20
      $region19: #{_ae_forward_impl.1} parent=11 // pred_region
        _
      $region20: #{_ae_forward_impl.1} parent=11 // pred_fallthru
        _
      // Predicated region
      $region21: #{_ae_forward_impl.1} parent=11 // pred_check
        %p168 = pneg %p100
      $region22: #{_ae_forward_impl.1} parent=11 // pred_check_branch
        %170 = sbr.rel (%p168) target = $region24
      $region23: #{_ae_forward_impl.1} parent=11 // pred_region
        _
      $region24: #{_ae_forward_impl.1} parent=11 // pred_fallthru
        _
      // Predicated region
      $region25: #{_ae_forward_impl.1} parent=11 // pred_check
        %p171 = pneg %p121
      $region26: #{_ae_forward_impl.1} parent=11 // pred_check_branch
        %173 = sbr.rel (%p171) target = $region28
      $region27: #{_ae_forward_impl.1} parent=11 // pred_region
        _
      $region28: #{_ae_forward_impl.1} parent=11 // pred_fallthru
        _
    $region12: #{_ae_forward_impl.1} parent=5 // pred_fallthru
      _
    %p174 = scmp.lt.s32.totalorder %s11, 2
    // Predicated region
    $region29: #{_ae_forward_impl.1} parent=5 // pred_check
      %p175 = pneg %p174
    $region30: #{_ae_forward_impl.1} parent=5 // pred_check_branch
      %177 = sbr.rel (%p175) target = $region32
    $region31: #{_ae_forward_impl.1} parent=5 // pred_region
      // Predicated region
      $region33: #{_ae_forward_impl.1} parent=31 // pred_check
        %p178 = pneg %p31
      $region34: #{_ae_forward_impl.1} parent=31 // pred_check_branch
        %180 = sbr.rel (%p178) target = $region36
      $region35: #{_ae_forward_impl.1} parent=31 // pred_region
        %s181 = smul.u32 16, %s11
        %p182 = scmp.lt.s32.totalorder %s181, 31
        %s183 = scalar_select %p182, %s181, 31
        %s184 = smul.addr %s183, 8
        %s185 = scalar_lea.vmem %s0, %s184
        %s186 = smul.u32 16, %s11
      $region36: #{_ae_forward_impl.1} parent=31 // pred_fallthru
        _
    $region32: #{_ae_forward_impl.1} parent=5 // pred_fallthru
      _
    %p187 = scmp.le.s32.totalorder 1, %s11
    %p188 = scmp.lt.s32.totalorder %s11, 3
    %p189 = pnand %p187, %p188
    %p190 = pneg %p189
    // Predicated region
    $region37: #{_ae_forward_impl.1} parent=5 // pred_check
      _
    $region38: #{_ae_forward_impl.1} parent=5 // pred_check_branch
      %192 = sbr.rel (%p189) target = $region40
    $region39: #{_ae_forward_impl.1} parent=5 // pred_region
      %s193 = ssub.s32 %s11, 1
      %s194 = smul.u32 16, %s16
      %p195 = scmp.lt.s32.totalorder %s194, 31
      %s196 = scalar_select %p195, %s194, 31
      %s197 = smul.addr %s196, 8
      %s198 = scalar_lea.vmem %s0, %s197
      %p199 = pneg %p37
      %p200 = pneg %p34
      %p201 = pneg %p58
      %p202 = pneg %p55
      %p203 = pneg %p79
      %p204 = pneg %p76
      %p205 = pneg %p100
      %p206 = pneg %p97
      %p207 = pneg %p121
      %p208 = pneg %p118
      %p209 = pneg %p147
      %p210 = pneg %p144
      %s211 = smul.u32 16, %s16
      %p212 = scmp.lt.s32.totalorder %s211, 31
      %s213 = scalar_select %p212, %s211, 31
      %s214 = smul.addr %s213, 8
      %s215 = scalar_lea.vmem %s5, %s214
      %s216 = smul.u32 16, %s16
      %p217 = scmp.lt.s32.totalorder %s216, 31
      %s218 = scalar_select %p217, %s216, 31
      %s219 = smul.addr %s218, 8
      %s220 = scalar_lea.vmem %s0, %s219
      %s221 = smul.u32 16, %s16
      %s222 = smul.u32 16, %s16
      %p223 = scmp.lt.s32.totalorder %s222, 31
      %s224 = scalar_select %p223, %s222, 31
      %s225 = smul.addr %s224, 8
      %s226 = scalar_lea.vmem %s5, %s225
      %s227 = smul.u32 16, %s16
      %v229 = vld [vmem:[%s220] sm:$0xff]
      %v230 = vld [vmem:[%s220 + $0x8] sm:$0xff]
      %v231 = vld [vmem:[%s220 + $0x10] sm:$0xff]
      %v232 = vld [vmem:[%s220 + $0x18] sm:$0xff]
      %v233 = vld [vmem:[%s220 + $0x20] sm:$0xff]
      %v234 = vld [vmem:[%s220 + $0x28] sm:$0xff]
      %v235 = vld [vmem:[%s220 + $0x30] sm:$0xff]
      %v236 = vld [vmem:[%s220 + $0x38] sm:$0xff]
      %v237 = vld [vmem:[%s220 + $0x40] sm:$0xff]
      %v238 = vld [vmem:[%s220 + $0x48] sm:$0xff]
      %v239 = vld [vmem:[%s220 + $0x50] sm:$0xff]
      %v240 = vld [vmem:[%s220 + $0x58] sm:$0xff]
      %v241 = vld [vmem:[%s220 + $0x60] sm:$0xff]
      %v242 = vld [vmem:[%s220 + $0x68] sm:$0xff]
      %v243 = vld [vmem:[%s220 + $0x70] sm:$0xff]
      %v244 = vld [vmem:[%s220 + $0x78] sm:$0xff]
      %v245 = vpack.c.bf16 %v230, %v229
      %v246 = vpack.c.bf16 %v232, %v231
      %v247 = vpack.c.bf16 %v234, %v233
      %v248 = vpack.c.bf16 %v236, %v235
      %v249 = vpack.c.bf16 %v238, %v237
      %v250 = vpack.c.bf16 %v240, %v239
      %v251 = vpack.c.bf16 %v242, %v241
      %v252 = vpack.c.bf16 %v244, %v243
      %v253 = vld [vmem:[%s1] sm:$0xf]
      %v254 = vld [vmem:[%s1 + $0x4] sm:$0xf]
      %v255 = vld [vmem:[%s1 + $0x8] sm:$0xf]
      %v256 = vld [vmem:[%s1 + $0xc] sm:$0xf]
      %v257 = vld [vmem:[%s1 + $0x10] sm:$0xf]
      %v258 = vld [vmem:[%s1 + $0x14] sm:$0xf]
      %v259 = vld [vmem:[%s1 + $0x18] sm:$0xf]
      %v260 = vld [vmem:[%s1 + $0x1c] sm:$0xf]
      %v261 = vld [vmem:[%s2] sm:$0x1]
      %v263 = vlaneseq
      %v264 = vshrl.u32 %v263, 7
      %v265 = vsub.s32 0, %v264
      %v266 = vrot.slane %v261, %v265
      %v276 = vunpack.c.l.b16 %v253
      %v277 = vunpack.c.l.b16 %v254
      %v278 = vunpack.c.l.b16 %v255
      %v279 = vunpack.c.l.b16 %v256
      %v280 = vunpack.c.l.b16 %v257
      %v281 = vunpack.c.l.b16 %v258
      %v282 = vunpack.c.l.b16 %v259
      %v283 = vunpack.c.l.b16 %v260
      %v284 = vpack.c.b16 %v277, %v276
      %v285 = vpack.c.b16 %v279, %v278
      %v286 = vpack.c.b16 %v281, %v280
      %v287 = vpack.c.b16 %v283, %v282
      %vm292 = vcmask 523264
      %v294 = vsel %vm292, %v245, 0
      %v297 = vsel %vm292, %v246, 0
      %v300 = vsel %vm292, %v247, 0
      %v303 = vsel %vm292, %v248, 0
      %v306 = vsel %vm292, %v249, 0
      %v309 = vsel %vm292, %v250, 0
      %v312 = vsel %vm292, %v251, 0
      %v315 = vsel %vm292, %v252, 0
      %317 = vmatprep.subr.bf16.mxu0 0
      %318 = vmatpush1.bf16.msra.mxu0 0
      %319 = vmatprep.subr.bf16.mxu0 0
      %320 = vmatpush1.bf16.msra.mxu0 0
      %321 = vmatprep.subr.bf16.mxu0 0
      %322 = vmatpush1.bf16.msra.mxu0 0
      %323 = vmatprep.subr.bf16.mxu0 0
      %324 = vmatpush1.bf16.msra.mxu0 0
      %325 = vmatprep.subr.bf16.mxu0 0
      %326 = vmatpush1.bf16.msra.mxu0 %v287
      %327 = vmatprep.subr.bf16.mxu0 0
      %328 = vmatpush1.bf16.msra.mxu0 %v286
      %329 = vmatprep.subr.bf16.mxu0 0
      %330 = vmatpush1.bf16.msra.mxu0 %v285
      %331 = vmatprep.subr.bf16.mxu0 0
      %332 = vmatpush1.bf16.msra.mxu0 %v284
      %333 = vmatprep.subr.bf16.mxu0 0
      %334 = vmatpush2.bf16.msra.mxu0 0
      %335 = vmatprep.subr.bf16.mxu0 0
      %336 = vmatpush2.bf16.msra.mxu0 0
      %337 = vmatprep.subr.bf16.mxu0 0
      %338 = vmatpush2.bf16.msra.mxu0 0
      %339 = vmatprep.subr.bf16.mxu0 0
      %340 = vmatpush2.bf16.msra.mxu0 0
      %341 = vmatprep.subr.bf16.mxu0 0
      %342 = vmatpush2.bf16.msra.mxu0 0
      %343 = vmatprep.subr.bf16.mxu0 0
      %344 = vmatpush2.bf16.msra.mxu0 0
      %345 = vmatprep.subr.bf16.mxu0 0
      %346 = vmatpush2.bf16.msra.mxu0 0
      %347 = vmatprep.subr.bf16.mxu0 0
      %348 = vmatpush2.bf16.msra.mxu0 0
      %349 = vmatprep.mubr.bf16.mxu0 0
      %350 = vmatmul.mubr.bf16.gmra.mxu0 %v294
      %v351 = vpop.f32.mrf.mxu0
      %v352 = vadd.f32 %v266, %v351
      %v353 = vpop.f32.mrf.mxu0
      %v354 = vpop.f32.mrf.mxu0
      %v355 = vadd.f32 %v266, %v354
      %v356 = vpop.f32.mrf.mxu0
      %357 = vmatprep.mubr.bf16.mxu0 0
      %358 = vmatmul.mubr.bf16.gmra.mxu0 %v297
      %v359 = vpop.f32.mrf.mxu0
      %v360 = vadd.f32 %v266, %v359
      %v361 = vpop.f32.mrf.mxu0
      %v362 = vpop.f32.mrf.mxu0
      %v363 = vadd.f32 %v266, %v362
      %v364 = vpop.f32.mrf.mxu0
      %365 = vmatprep.mubr.bf16.mxu0 0
      %366 = vmatmul.mubr.bf16.gmra.mxu0 %v300
      %v367 = vpop.f32.mrf.mxu0
      %v368 = vadd.f32 %v266, %v367
      %v369 = vpop.f32.mrf.mxu0
      %v370 = vpop.f32.mrf.mxu0
      %v371 = vadd.f32 %v266, %v370
      %v372 = vpop.f32.mrf.mxu0
      %373 = vmatprep.mubr.bf16.mxu0 0
      %374 = vmatmul.mubr.bf16.gmra.mxu0 %v303
      %v375 = vpop.f32.mrf.mxu0
      %v376 = vadd.f32 %v266, %v375
      %v377 = vpop.f32.mrf.mxu0
      %v378 = vpop.f32.mrf.mxu0
      %v379 = vadd.f32 %v266, %v378
      %v380 = vpop.f32.mrf.mxu0
      %381 = vmatprep.mubr.bf16.mxu0 0
      %382 = vmatmul.mubr.bf16.gmra.mxu0 %v306
      %v383 = vpop.f32.mrf.mxu0
      %v384 = vadd.f32 %v266, %v383
      %v385 = vpop.f32.mrf.mxu0
      %v386 = vpop.f32.mrf.mxu0
      %v387 = vadd.f32 %v266, %v386
      %v388 = vpop.f32.mrf.mxu0
      %389 = vmatprep.mubr.bf16.mxu0 0
      %390 = vmatmul.mubr.bf16.gmra.mxu0 %v309
      %v391 = vpop.f32.mrf.mxu0
      %v392 = vadd.f32 %v266, %v391
      %v393 = vpop.f32.mrf.mxu0
      %v394 = vpop.f32.mrf.mxu0
      %v395 = vadd.f32 %v266, %v394
      %v396 = vpop.f32.mrf.mxu0
      %397 = vmatprep.mubr.bf16.mxu0 0
      %398 = vmatmul.mubr.bf16.gmra.mxu0 %v312
      %v399 = vpop.f32.mrf.mxu0
      %v400 = vadd.f32 %v266, %v399
      %v401 = vpop.f32.mrf.mxu0
      %v402 = vpop.f32.mrf.mxu0
      %v403 = vadd.f32 %v266, %v402
      %v404 = vpop.f32.mrf.mxu0
      %405 = vmatprep.mubr.bf16.mxu0 0
      %406 = vmatmul.mubr.bf16.gmra.mxu0 %v315
      %v407 = vpop.f32.mrf.mxu0
      %v408 = vadd.f32 %v266, %v407
      %v409 = vpop.f32.mrf.mxu0
      %v410 = vpop.f32.mrf.mxu0
      %v411 = vadd.f32 %v266, %v410
      %v412 = vpop.f32.mrf.mxu0
      %413 = vdwg.mxu0
      %v414 = vtanh.pop %v352
      %v415 = vtanh.pop %v355
      %v416 = vtanh.pop %v360
      %v417 = vtanh.pop %v363
      %v418 = vtanh.pop %v368
      %v419 = vtanh.pop %v371
      %v420 = vtanh.pop %v376
      %v421 = vtanh.pop %v379
      %v422 = vtanh.pop %v384
      %v423 = vtanh.pop %v387
      %v424 = vtanh.pop %v392
      %v425 = vtanh.pop %v395
      %v426 = vtanh.pop %v400
      %v427 = vtanh.pop %v403
      %v428 = vtanh.pop %v408
      %v429 = vtanh.pop %v411
      %v430 = vpack.c.bf16 %v415, %v414
      %v431 = vpack.c.bf16 %v417, %v416
      %v432 = vpack.c.bf16 %v419, %v418
      %v433 = vpack.c.bf16 %v421, %v420
      %v434 = vpack.c.bf16 %v423, %v422
      %v435 = vpack.c.bf16 %v425, %v424
      %v436 = vpack.c.bf16 %v427, %v426
      %v437 = vpack.c.bf16 %v429, %v428
      %v446 = vunpack.c.l.b16 %v430
      %v447 = vunpack.c.h.b16 %v430
      %v448 = vunpack.c.l.b16 %v431
      %v449 = vunpack.c.h.b16 %v431
      %v450 = vunpack.c.l.b16 %v432
      %v451 = vunpack.c.h.b16 %v432
      %v452 = vunpack.c.l.b16 %v433
      %v453 = vunpack.c.h.b16 %v433
      %v454 = vunpack.c.l.b16 %v434
      %v455 = vunpack.c.h.b16 %v434
      %v456 = vunpack.c.l.b16 %v435
      %v457 = vunpack.c.h.b16 %v435
      %v458 = vunpack.c.l.b16 %v436
      %v459 = vunpack.c.h.b16 %v436
      %v460 = vunpack.c.l.b16 %v437
      %v461 = vunpack.c.h.b16 %v437
      %v462 = vpack.c.b16 %v446, %v446
      %v463 = vpack.c.b16 %v447, %v447
      %v464 = vpack.c.b16 %v448, %v448
      %v465 = vpack.c.b16 %v449, %v449
      %v466 = vpack.c.b16 %v450, %v450
      %v467 = vpack.c.b16 %v451, %v451
      %v468 = vpack.c.b16 %v452, %v452
      %v469 = vpack.c.b16 %v453, %v453
      %v470 = vpack.c.b16 %v454, %v454
      %v471 = vpack.c.b16 %v455, %v455
      %v472 = vpack.c.b16 %v456, %v456
      %v473 = vpack.c.b16 %v457, %v457
      %v474 = vpack.c.b16 %v458, %v458
      %v475 = vpack.c.b16 %v459, %v459
      %v476 = vpack.c.b16 %v460, %v460
      %v477 = vpack.c.b16 %v461, %v461
      %vm494 = vcmask 257024
      %495 = vst.msk [vmem:[#allocation2] sm:$0xf] %vm494, %v462
      %496 = vst.msk [vmem:[#allocation2 + $0x4] sm:$0xf] %vm494, %v463
      %497 = vst.msk [vmem:[#allocation2 + $0x8] sm:$0xf] %vm494, %v464
      %498 = vst.msk [vmem:[#allocation2 + $0xc] sm:$0xf] %vm494, %v465
      %499 = vst.msk [vmem:[#allocation2 + $0x10] sm:$0xf] %vm494, %v466
      %500 = vst.msk [vmem:[#allocation2 + $0x14] sm:$0xf] %vm494, %v467
      %501 = vst.msk [vmem:[#allocation2 + $0x18] sm:$0xf] %vm494, %v468
      %502 = vst.msk [vmem:[#allocation2 + $0x1c] sm:$0xf] %vm494, %v469
      %503 = vst.msk [vmem:[#allocation2 + $0x20] sm:$0xf] %vm494, %v470
      %504 = vst.msk [vmem:[#allocation2 + $0x24] sm:$0xf] %vm494, %v471
      %505 = vst.msk [vmem:[#allocation2 + $0x28] sm:$0xf] %vm494, %v472
      %506 = vst.msk [vmem:[#allocation2 + $0x2c] sm:$0xf] %vm494, %v473
      %507 = vst.msk [vmem:[#allocation2 + $0x30] sm:$0xf] %vm494, %v474
      %508 = vst.msk [vmem:[#allocation2 + $0x34] sm:$0xf] %vm494, %v475
      %509 = vst.msk [vmem:[#allocation2 + $0x38] sm:$0xf] %vm494, %v476
      %510 = vst.msk [vmem:[#allocation2 + $0x3c] sm:$0xf] %vm494, %v477
      %v511 = vld [vmem:[#allocation2] sm:$0xf]
      %v512 = vld [vmem:[#allocation2 + $0x4] sm:$0xf]
      %v513 = vld [vmem:[#allocation2 + $0x8] sm:$0xf]
      %v514 = vld [vmem:[#allocation2 + $0xc] sm:$0xf]
      %v515 = vld [vmem:[#allocation2 + $0x10] sm:$0xf]
      %v516 = vld [vmem:[#allocation2 + $0x14] sm:$0xf]
      %v517 = vld [vmem:[#allocation2 + $0x18] sm:$0xf]
      %v518 = vld [vmem:[#allocation2 + $0x1c] sm:$0xf]
      %v519 = vld [vmem:[#allocation2 + $0x20] sm:$0xf]
      %v520 = vld [vmem:[#allocation2 + $0x24] sm:$0xf]
      %v521 = vld [vmem:[#allocation2 + $0x28] sm:$0xf]
      %v522 = vld [vmem:[#allocation2 + $0x2c] sm:$0xf]
      %v523 = vld [vmem:[#allocation2 + $0x30] sm:$0xf]
      %v524 = vld [vmem:[#allocation2 + $0x34] sm:$0xf]
      %v525 = vld [vmem:[#allocation2 + $0x38] sm:$0xf]
      %v526 = vld [vmem:[#allocation2 + $0x3c] sm:$0xf]
      %v527 = vld [vmem:[%s3] sm:$0xf]
      %v528 = vld [vmem:[%s3 + $0x4] sm:$0xf]
      %v529 = vld [vmem:[%s3 + $0x8] sm:$0xf]
      %v530 = vld [vmem:[%s3 + $0xc] sm:$0xf]
      %v531 = vld [vmem:[%s4] sm:$0x1]
      %v533 = vlaneseq
      %v534 = vshrl.u32 %v533, 7
      %v535 = vsub.s32 0, %v534
      %v536 = vrot.slane %v531, %v535
      %v554 = vunpack.c.l.b16 %v511
      %v555 = vunpack.c.l.b16 %v512
      %v556 = vunpack.c.l.b16 %v513
      %v557 = vunpack.c.l.b16 %v514
      %v558 = vunpack.c.l.b16 %v515
      %v559 = vunpack.c.l.b16 %v516
      %v560 = vunpack.c.l.b16 %v517
      %v561 = vunpack.c.l.b16 %v518
      %v562 = vunpack.c.l.b16 %v519
      %v563 = vunpack.c.l.b16 %v520
      %v564 = vunpack.c.l.b16 %v521
      %v565 = vunpack.c.l.b16 %v522
      %v566 = vunpack.c.l.b16 %v523
      %v567 = vunpack.c.l.b16 %v524
      %v568 = vunpack.c.l.b16 %v525
      %v569 = vunpack.c.l.b16 %v526
      %v570 = vpack.c.b16 %v555, %v554
      %v571 = vpack.c.b16 %v557, %v556
      %v572 = vpack.c.b16 %v559, %v558
      %v573 = vpack.c.b16 %v561, %v560
      %v574 = vpack.c.b16 %v563, %v562
      %v575 = vpack.c.b16 %v565, %v564
      %v576 = vpack.c.b16 %v567, %v566
      %v577 = vpack.c.b16 %v569, %v568
      %v582 = vunpack.c.l.b16 %v527
      %v583 = vunpack.c.l.b16 %v528
      %v584 = vunpack.c.l.b16 %v529
      %v585 = vunpack.c.l.b16 %v530
      %v586 = vpack.c.b16 %v583, %v582
      %v587 = vpack.c.b16 %v585, %v584
      %vm590 = vcmask 261120
      %v592 = vsel %vm590, %v570, 0
      %v595 = vsel %vm590, %v571, 0
      %v598 = vsel %vm590, %v572, 0
      %v601 = vsel %vm590, %v573, 0
      %v604 = vsel %vm590, %v574, 0
      %v607 = vsel %vm590, %v575, 0
      %v610 = vsel %vm590, %v576, 0
      %v613 = vsel %vm590, %v577, 0
      %615 = vmatprep.subr.bf16.mxu0 0
      %616 = vmatpush1.bf16.msra.mxu0 0
      %617 = vmatprep.subr.bf16.mxu0 0
      %618 = vmatpush1.bf16.msra.mxu0 0
      %619 = vmatprep.subr.bf16.mxu0 0
      %620 = vmatpush1.bf16.msra.mxu0 0
      %621 = vmatprep.subr.bf16.mxu0 0
      %622 = vmatpush1.bf16.msra.mxu0 0
      %623 = vmatprep.subr.bf16.mxu0 0
      %624 = vmatpush1.bf16.msra.mxu0 0
      %625 = vmatprep.subr.bf16.mxu0 0
      %626 = vmatpush1.bf16.msra.mxu0 0
      %627 = vmatprep.subr.bf16.mxu0 0
      %628 = vmatpush1.bf16.msra.mxu0 %v587
      %629 = vmatprep.subr.bf16.mxu0 0
      %630 = vmatpush1.bf16.msra.mxu0 %v586
      %631 = vmatprep.subr.bf16.mxu0 0
      %632 = vmatpush2.bf16.msra.mxu0 0
      %633 = vmatprep.subr.bf16.mxu0 0
      %634 = vmatpush2.bf16.msra.mxu0 0
      %635 = vmatprep.subr.bf16.mxu0 0
      %636 = vmatpush2.bf16.msra.mxu0 0
      %637 = vmatprep.subr.bf16.mxu0 0
      %638 = vmatpush2.bf16.msra.mxu0 0
      %639 = vmatprep.subr.bf16.mxu0 0
      %640 = vmatpush2.bf16.msra.mxu0 0
      %641 = vmatprep.subr.bf16.mxu0 0
      %642 = vmatpush2.bf16.msra.mxu0 0
      %643 = vmatprep.subr.bf16.mxu0 0
      %644 = vmatpush2.bf16.msra.mxu0 0
      %645 = vmatprep.subr.bf16.mxu0 0
      %646 = vmatpush2.bf16.msra.mxu0 0
      %647 = vmatprep.mubr.bf16.mxu0 0
      %648 = vmatmul.mubr.bf16.gmra.mxu0 %v592
      %v649 = vpop.f32.mrf.mxu0
      %v650 = vadd.f32 %v536, %v649
      %v651 = vpop.f32.mrf.mxu0
      %v652 = vpop.f32.mrf.mxu0
      %v653 = vadd.f32 %v536, %v652
      %v654 = vpop.f32.mrf.mxu0
      %655 = vmatprep.mubr.bf16.mxu0 0
      %656 = vmatmul.mubr.bf16.gmra.mxu0 %v595
      %v657 = vpop.f32.mrf.mxu0
      %v658 = vadd.f32 %v536, %v657
      %v659 = vpop.f32.mrf.mxu0
      %v660 = vpop.f32.mrf.mxu0
      %v661 = vadd.f32 %v536, %v660
      %v662 = vpop.f32.mrf.mxu0
      %663 = vmatprep.mubr.bf16.mxu0 0
      %664 = vmatmul.mubr.bf16.gmra.mxu0 %v598
      %v665 = vpop.f32.mrf.mxu0
      %v666 = vadd.f32 %v536, %v665
      %v667 = vpop.f32.mrf.mxu0
      %v668 = vpop.f32.mrf.mxu0
      %v669 = vadd.f32 %v536, %v668
      %v670 = vpop.f32.mrf.mxu0
      %671 = vmatprep.mubr.bf16.mxu0 0
      %672 = vmatmul.mubr.bf16.gmra.mxu0 %v601
      %v673 = vpop.f32.mrf.mxu0
      %v674 = vadd.f32 %v536, %v673
      %v675 = vpop.f32.mrf.mxu0
      %v676 = vpop.f32.mrf.mxu0
      %v677 = vadd.f32 %v536, %v676
      %v678 = vpop.f32.mrf.mxu0
      %679 = vmatprep.mubr.bf16.mxu0 0
      %680 = vmatmul.mubr.bf16.gmra.mxu0 %v604
      %v681 = vpop.f32.mrf.mxu0
      %v682 = vadd.f32 %v536, %v681
      %v683 = vpop.f32.mrf.mxu0
      %v684 = vpop.f32.mrf.mxu0
      %v685 = vadd.f32 %v536, %v684
      %v686 = vpop.f32.mrf.mxu0
      %687 = vmatprep.mubr.bf16.mxu0 0
      %688 = vmatmul.mubr.bf16.gmra.mxu0 %v607
      %v689 = vpop.f32.mrf.mxu0
      %v690 = vadd.f32 %v536, %v689
      %v691 = vpop.f32.mrf.mxu0
      %v692 = vpop.f32.mrf.mxu0
      %v693 = vadd.f32 %v536, %v692
      %v694 = vpop.f32.mrf.mxu0
      %695 = vmatprep.mubr.bf16.mxu0 0
      %696 = vmatmul.mubr.bf16.gmra.mxu0 %v610
      %v697 = vpop.f32.mrf.mxu0
      %v698 = vadd.f32 %v536, %v697
      %v699 = vpop.f32.mrf.mxu0
      %v700 = vpop.f32.mrf.mxu0
      %v701 = vadd.f32 %v536, %v700
      %v702 = vpop.f32.mrf.mxu0
      %703 = vmatprep.mubr.bf16.mxu0 0
      %704 = vmatmul.mubr.bf16.gmra.mxu0 %v613
      %v705 = vpop.f32.mrf.mxu0
      %v706 = vadd.f32 %v536, %v705
      %v707 = vpop.f32.mrf.mxu0
      %v708 = vpop.f32.mrf.mxu0
      %v709 = vadd.f32 %v536, %v708
      %v710 = vpop.f32.mrf.mxu0
      %711 = vdwg.mxu0
      %v712 = vtanh.pop %v650
      %v713 = vtanh.pop %v653
      %v714 = vtanh.pop %v658
      %v715 = vtanh.pop %v661
      %v716 = vtanh.pop %v666
      %v717 = vtanh.pop %v669
      %v718 = vtanh.pop %v674
      %v719 = vtanh.pop %v677
      %v720 = vtanh.pop %v682
      %v721 = vtanh.pop %v685
      %v722 = vtanh.pop %v690
      %v723 = vtanh.pop %v693
      %v724 = vtanh.pop %v698
      %v725 = vtanh.pop %v701
      %v726 = vtanh.pop %v706
      %v727 = vtanh.pop %v709
      %728 = vst.msk [vmem:[%s226] sm:$0xff] %vm292, %v712
      %729 = vst.msk [vmem:[%s226 + $0x8] sm:$0xff] %vm292, %v713
      %730 = vst.msk [vmem:[%s226 + $0x10] sm:$0xff] %vm292, %v714
      %731 = vst.msk [vmem:[%s226 + $0x18] sm:$0xff] %vm292, %v715
      %732 = vst.msk [vmem:[%s226 + $0x20] sm:$0xff] %vm292, %v716
      %733 = vst.msk [vmem:[%s226 + $0x28] sm:$0xff] %vm292, %v717
      %734 = vst.msk [vmem:[%s226 + $0x30] sm:$0xff] %vm292, %v718
      %735 = vst.msk [vmem:[%s226 + $0x38] sm:$0xff] %vm292, %v719
      %736 = vst.msk [vmem:[%s226 + $0x40] sm:$0xff] %vm292, %v720
      %737 = vst.msk [vmem:[%s226 + $0x48] sm:$0xff] %vm292, %v721
      %738 = vst.msk [vmem:[%s226 + $0x50] sm:$0xff] %vm292, %v722
      %739 = vst.msk [vmem:[%s226 + $0x58] sm:$0xff] %vm292, %v723
      %740 = vst.msk [vmem:[%s226 + $0x60] sm:$0xff] %vm292, %v724
      %741 = vst.msk [vmem:[%s226 + $0x68] sm:$0xff] %vm292, %v725
      %742 = vst.msk [vmem:[%s226 + $0x70] sm:$0xff] %vm292, %v726
      %743 = vst.msk [vmem:[%s226 + $0x78] sm:$0xff] %vm292, %v727
      %s744 = smul.u32 16, %s16
      %p745 = scmp.lt.s32.totalorder %s744, 31
      %s746 = scalar_select %p745, %s744, 31
      %s747 = smul.addr %s746, 8
      %s748 = scalar_lea.vmem %s5, %s747
      // Predicated region
      $region41: #{_ae_forward_impl.1} parent=39 // pred_check
        %p749 = pneg %p144
      $region42: #{_ae_forward_impl.1} parent=39 // pred_check_branch
        %751 = sbr.rel (%p749) target = $region44
      $region43: #{_ae_forward_impl.1} parent=39 // pred_region
        %s752 = smul.u32 16, %s16
      $region44: #{_ae_forward_impl.1} parent=39 // pred_fallthru
        _
    $region40: #{_ae_forward_impl.1} parent=5 // pred_fallthru
      _
    %p753 = scmp.le.s32.totalorder 2, %s11
    // Predicated region
    $region45: #{_ae_forward_impl.1} parent=5 // pred_check
      %p754 = pneg %p753
    $region46: #{_ae_forward_impl.1} parent=5 // pred_check_branch
      %756 = sbr.rel (%p754) target = $region48
    $region47: #{_ae_forward_impl.1} parent=5 // pred_region
      %s757 = ssub.s32 %s11, 2
      // Predicated region
      $region49: #{_ae_forward_impl.1} parent=47 // pred_check
        %p758 = pneg %p150
      $region50: #{_ae_forward_impl.1} parent=47 // pred_check_branch
        %760 = sbr.rel (%p758) target = $region52
      $region51: #{_ae_forward_impl.1} parent=47 // pred_region
        %s761 = smul.u32 16, %s17
        %p762 = scmp.lt.s32.totalorder %s761, 31
        %s763 = scalar_select %p762, %s761, 31
        %s764 = smul.addr %s763, 8
        %s765 = scalar_lea.vmem %s5, %s764
      $region52: #{_ae_forward_impl.1} parent=47 // pred_fallthru
        _
    $region48: #{_ae_forward_impl.1} parent=5 // pred_fallthru
      _
  $region6: #{_ae_forward_impl.1} parent=0 // loop_footer
    %s15 = sadd.s32 1, %s11
  $region7: #{_ae_forward_impl.1} parent=0 // loop_footer_branch
    %10 = sbr.rel target = $region3
  $region8: #{_ae_forward_impl.1} parent=0 // loop_exit
    _

</llo_original>
